<compile_context>
chip_gen: v7x
topology: tpu7x:2x2x1
jax: 0.10.0
libtpu: 0.0.40
codegen_flags: <defaults>
</compile_context>

<pallas_src>
import jax
import jax.numpy as jnp
from jax import lax
from jax.experimental import pallas as pl
from jax.experimental.pallas import tpu as pltpu

_EPS = 1e-5
_LANE = 128
_VMEM_LIMIT = 32 * 1024 * 1024  # explicit scoped-VMEM budget, safe on v5e/v6e/v7x


def _round_up(a, b):
    return (a + b - 1) // b * b


# ---------------------------------------------------------------------------
# Pass 1: conv tile on MXU -> accumulate per-channel sum / sum-of-squares.
# ---------------------------------------------------------------------------
def _conv_stats_kernel(p_ref, w_ref, sum_ref, sq_ref, acc_sum, acc_sq):
    i = pl.program_id(0)

    @pl.when(i == 0)
    def _init():
        acc_sum[...] = jnp.zeros_like(acc_sum)
        acc_sq[...] = jnp.zeros_like(acc_sq)

    conv = jnp.dot(p_ref[...], w_ref[...], preferred_element_type=jnp.float32)
    acc_sum[...] += jnp.sum(conv, axis=0, keepdims=True)
    acc_sq[...] += jnp.sum(conv * conv, axis=0, keepdims=True)

    @pl.when(i == pl.num_programs(0) - 1)
    def _finalize():
        sum_ref[...] = acc_sum[...]
        sq_ref[...] = acc_sq[...]


# ---------------------------------------------------------------------------
# Pass 2: conv tile on MXU -> folded BN scale/shift -> ReLU6 (lane-dense store).
# ---------------------------------------------------------------------------
def _conv_bn_relu6_kernel(p_ref, w_ref, scale_ref, shift_ref, o_ref):
    conv = jnp.dot(p_ref[...], w_ref[...], preferred_element_type=jnp.float32)
    y = conv * scale_ref[...] + shift_ref[...]
    o_ref[...] = jnp.minimum(jnp.maximum(y, 0.0), 6.0)


def conv_bn_relu6(x, w, gamma, beta, *, stride=2, pad=1,
                  compute_dtype=jnp.bfloat16, tm=512):
    """Conv2d (no bias) + BatchNorm2d (training-mode batch stats) + ReLU6.

    x: (N, Cin, H, W) f32, w: (Cout, Cin, KH, KW) f32, gamma/beta: (Cout,) f32.
    Returns (N, Cout, Ho, Wo) f32.
    """
    N, C, H, W = x.shape
    Cout, Cin, KH, KW = w.shape
    assert C == Cin
    Ho = (H + 2 * pad - KH) // stride + 1
    Wo = (W + 2 * pad - KW) // stride + 1

    M = N * Ho * Wo
    K = Cin * KH * KW
    Cpad = _round_up(Cout, _LANE)            # lane-dense output channels
    tm = min(tm, _round_up(M, _LANE))        # rows per grid step (128-aligned)
    M_pad = _round_up(M, tm)
    n_tiles = M_pad // tm

    # --- im2col (wrapper glue, plain JAX); columns ordered (cin, kh, kw) so it
    #     matches PyTorch's OIHW weight flatten.  Built directly in bf16. ------
    xc = x.astype(compute_dtype)
    xp = jnp.pad(xc, ((0, 0), (0, 0), (pad, pad), (pad, pad)))
    cols = []
    for kh in range(KH):
        for kw in range(KW):
            cols.append(
                xp[:, :, kh:kh + Ho * stride:stride, kw:kw + Wo * stride:stride])
    p = jnp.stack(cols, axis=2)                            # (N, Cin, KH*KW, Ho, Wo)
    p = p.transpose(0, 3, 4, 1, 2).reshape(M, K)
    p = jnp.pad(p, ((0, M_pad - M), (0, 0)))               # zero rows: no effect on stats

    wt = jnp.pad(w.reshape(Cout, K).T, ((0, 0), (0, Cpad - Cout)))
    wt = wt.astype(compute_dtype)                          # (K, Cpad)
    gamma_p = jnp.pad(gamma.astype(jnp.float32), (0, Cpad - Cout))
    beta_p = jnp.pad(beta.astype(jnp.float32), (0, Cpad - Cout))

    itemsize = jnp.dtype(compute_dtype).itemsize
    patch_spec = pl.BlockSpec((tm, K), lambda i: (i, 0))
    weight_spec = pl.BlockSpec((K, Cpad), lambda i: (0, 0))
    chan_spec = pl.BlockSpec((1, Cpad), lambda i: (0, 0))

    # ---------------- pass 1: global per-channel sum / sum-of-squares --------
    csum, csq = pl.pallas_call(
        _conv_stats_kernel,
        grid=(n_tiles,),
        in_specs=[patch_spec, weight_spec],
        out_specs=[chan_spec, chan_spec],
        out_shape=[jax.ShapeDtypeStruct((1, Cpad), jnp.float32),
                   jax.ShapeDtypeStruct((1, Cpad), jnp.float32)],
        scratch_shapes=[pltpu.VMEM((1, Cpad), jnp.float32),
                        pltpu.VMEM((1, Cpad), jnp.float32)],
        compiler_params=pltpu.CompilerParams(
            dimension_semantics=("arbitrary",),   # carries the stats accumulator
            vmem_limit_bytes=_VMEM_LIMIT),
        cost_estimate=pl.CostEstimate(
            flops=2 * M_pad * K * Cpad,
            transcendentals=0,
            bytes_accessed=M_pad * K * itemsize + K * Cpad * itemsize
            + 2 * Cpad * 4),
    )(p, wt)

    # --- fold BN (biased batch variance, PyTorch training-mode semantics) into
    #     one per-channel scale/shift; tiny (Cpad,) math stays in plain JAX f32.
    mean = csum[0] / M                       # divide by TRUE M (padded rows are 0)
    var = jnp.maximum(csq[0] / M - mean * mean, 0.0)
    inv_std = lax.rsqrt(var + _EPS)
    scale = (gamma_p * inv_std).reshape(1, Cpad)
    shift = (beta_p - mean * gamma_p * inv_std).reshape(1, Cpad)

    # ---------------- pass 2: normalize + ReLU6 (recompute conv tile) --------
    out = pl.pallas_call(
        _conv_bn_relu6_kernel,
        grid=(n_tiles,),
        in_specs=[patch_spec, weight_spec, chan_spec, chan_spec],
        out_specs=pl.BlockSpec((tm, Cpad), lambda i: (i, 0)),
        out_shape=jax.ShapeDtypeStruct((M_pad, Cpad), jnp.float32),
        compiler_params=pltpu.CompilerParams(
            dimension_semantics=("parallel",),    # independent tiles (2 TCs on v7x)
            vmem_limit_bytes=_VMEM_LIMIT),
        cost_estimate=pl.CostEstimate(
            flops=2 * M_pad * K * Cpad + 3 * M_pad * Cpad,
            transcendentals=0,
            bytes_accessed=M_pad * K * itemsize + K * Cpad * itemsize
            + 2 * Cpad * 4 + M_pad * Cpad * 4),
    )(p, wt, scale, shift)

    # back to NCHW
    return out[:M, :Cout].reshape(N, Ho, Wo, Cout).transpose(0, 3, 1, 2)


def _reference(x, w, gamma, beta, *, stride=2, pad=1):
    conv = lax.conv_general_dilated(
        x, w, window_strides=(stride, stride),
        padding=((pad, pad), (pad, pad)),
        dimension_numbers=('NCHW', 'OIHW', 'NCHW'))
    mean = conv.mean(axis=(0, 2, 3), keepdims=True)
    var = conv.var(axis=(0, 2, 3), keepdims=True)
    y = (conv - mean) * lax.rsqrt(var + _EPS)
    y = y * gamma.reshape(1, -1, 1, 1) + beta.reshape(1, -1, 1, 1)
    return jnp.clip(y, 0.0, 6.0)


if __name__ == "__main__":
    key = jax.random.PRNGKey(0)
    k1, k2, k3, k4 = jax.random.split(key, 4)

    N, Cin, H, W = 2, 4, 16, 16
    Cout, KH, KW = 8, 3, 3

    x = jax.random.normal(k1, (N, Cin, H, W), dtype=jnp.float32)
    w = jax.random.normal(k2, (Cout, Cin, KH, KW), dtype=jnp.float32) * 0.1
    gamma = jax.random.normal(k3, (Cout,), dtype=jnp.float32) * 0.1 + 1.0
    beta = jax.random.normal(k4, (Cout,), dtype=jnp.float32) * 0.1

    ref = _reference(x, w, gamma, beta)

    # 1) exact-semantics path (f32 MXU inputs) vs f32 reference
    out_f32 = conv_bn_relu6(x, w, gamma, beta, compute_dtype=jnp.float32)
    jax.block_until_ready(out_f32)
    assert out_f32.shape == (N, Cout, 8, 8), out_f32.shape
    assert jnp.max(jnp.abs(out_f32 - ref)) < 1e-4

    # 2) default fast path (bf16 MXU inputs, f32 accumulation & BN statistics)
    #    checked against a reference fed the same bf16-rounded inputs, plus a
    #    loose sanity check against the pure-f32 reference.
    out_bf16 = conv_bn_relu6(x, w, gamma, beta)
    jax.block_until_ready(out_bf16)
    assert out_bf16.shape == (N, Cout, 8, 8), out_bf16.shape
    ref_b = _reference(x.astype(jnp.bfloat16).astype(jnp.float32),
                       w.astype(jnp.bfloat16).astype(jnp.float32), gamma, beta)
    assert jnp.max(jnp.abs(out_bf16 - ref_b)) < 1e-3
    assert jnp.max(jnp.abs(out_bf16 - ref)) < 5e-2

    print("KERNEL_OK")
</pallas_src>

<mosaic_0001>
module attributes {stable_mosaic.version = 11 : i64} {
  func.func @_conv_stats_kernel(%arg0: i32, %arg1: memref<128x36xf32, #tpu.memory_space<vmem>>, %arg2: memref<36x128xf32, #tpu.memory_space<vmem>>, %arg3: memref<1x128xf32, #tpu.memory_space<vmem>>, %arg4: memref<1x128xf32, #tpu.memory_space<vmem>>, %arg5: memref<1x128xf32, #tpu.memory_space<vmem>>, %arg6: memref<1x128xf32, #tpu.memory_space<vmem>>) attributes {dimension_semantics = [#tpu.dimension_semantics<arbitrary>], iteration_bounds = array<i64: 1>, scalar_prefetch = 0 : i64, scratch_operands = 2 : i64, tpu.core_type = #tpu.core_type<tc>, window_params = [{transform_indices = @transform_0, window_bounds = array<i64: 128, 36>}, {pipeline_mode = #tpu.pipeline_mode<synchronous>, transform_indices = @transform_1, window_bounds = array<i64: 36, 128>}, {pipeline_mode = #tpu.pipeline_mode<synchronous>, transform_indices = @transform_2, window_bounds = array<i64: 1, 128>}, {pipeline_mode = #tpu.pipeline_mode<synchronous>, transform_indices = @transform_3, window_bounds = array<i64: 1, 128>}]} {
    %c0_i32 = arith.constant 0 : i32
    %0 = arith.cmpi eq, %arg0, %c0_i32 : i32
    %1 = arith.extui %0 : i1 to i32
    %c0_i32_0 = arith.constant 0 : i32
    %2 = arith.cmpi ne, %1, %c0_i32_0 : i32
    scf.if %2 {
      %cst_16 = arith.constant 0.000000e+00 : f32
      %20 = vector.broadcast %cst_16 : f32 to vector<1x128xf32>
      %c0_17 = arith.constant 0 : index
      %c0_18 = arith.constant 0 : index
      %21 = vector.load %arg5[%c0_17, %c0_18] : memref<1x128xf32, #tpu.memory_space<vmem>>, vector<1x128xf32>
      tpu.vector_store %arg5[%c0_17, %c0_18], %20 {strides = array<i32>} : memref<1x128xf32, #tpu.memory_space<vmem>>, vector<1x128xf32>,
      %cst_19 = arith.constant 0.000000e+00 : f32
      %22 = vector.broadcast %cst_19 : f32 to vector<1x128xf32>
      %c0_20 = arith.constant 0 : index
      %c0_21 = arith.constant 0 : index
      %23 = vector.load %arg6[%c0_20, %c0_21] : memref<1x128xf32, #tpu.memory_space<vmem>>, vector<1x128xf32>
      tpu.vector_store %arg6[%c0_20, %c0_21], %22 {strides = array<i32>} : memref<1x128xf32, #tpu.memory_space<vmem>>, vector<1x128xf32>,
    } else {
    }
    %c0 = arith.constant 0 : index
    %c0_1 = arith.constant 0 : index
    %3 = vector.load %arg1[%c0, %c0_1] : memref<128x36xf32, #tpu.memory_space<vmem>>, vector<128x36xf32>
    %c0_2 = arith.constant 0 : index
    %c0_3 = arith.constant 0 : index
    %4 = vector.load %arg2[%c0_2, %c0_3] : memref<36x128xf32, #tpu.memory_space<vmem>>, vector<36x128xf32>
    %cst = arith.constant dense<0.000000e+00> : vector<128x128xf32>
    %5 = tpu.matmul %3, %4, %cst {dimension_numbers = #tpu.dot_dimension_numbers<[1], [0], [0], [1], [0, 0, 1, 1], [], []>} : vector<128x36xf32>, vector<36x128xf32>, vector<128x128xf32> -> vector<128x128xf32>
    %c0_4 = arith.constant 0 : index
    %c0_5 = arith.constant 0 : index
    %6 = vector.load %arg5[%c0_4, %c0_5] : memref<1x128xf32, #tpu.memory_space<vmem>>, vector<1x128xf32>
    %cst_6 = arith.constant dense<0.000000e+00> : vector<128xf32>
    %7 = vector.multi_reduction <add>, %5, %cst_6 [0] : vector<128x128xf32> to vector<128xf32>
    %8 = vector.shape_cast %7 : vector<128xf32> to vector<1x128xf32>
    %9 = arith.addf %6, %8 : vector<1x128xf32>
    %c0_7 = arith.constant 0 : index
    %c0_8 = arith.constant 0 : index
    %10 = vector.load %arg5[%c0_7, %c0_8] : memref<1x128xf32, #tpu.memory_space<vmem>>, vector<1x128xf32>
    tpu.vector_store %arg5[%c0_7, %c0_8], %9 {strides = array<i32>} : memref<1x128xf32, #tpu.memory_space<vmem>>, vector<1x128xf32>,
    %c0_9 = arith.constant 0 : index
    %c0_10 = arith.constant 0 : index
    %11 = vector.load %arg6[%c0_9, %c0_10] : memref<1x128xf32, #tpu.memory_space<vmem>>, vector<1x128xf32>
    %12 = arith.mulf %5, %5 : vector<128x128xf32>
    %cst_11 = arith.constant dense<0.000000e+00> : vector<128xf32>
    %13 = vector.multi_reduction <add>, %12, %cst_11 [0] : vector<128x128xf32> to vector<128xf32>
    %14 = vector.shape_cast %13 : vector<128xf32> to vector<1x128xf32>
    %15 = arith.addf %11, %14 : vector<1x128xf32>
    %c0_12 = arith.constant 0 : index
    %c0_13 = arith.constant 0 : index
    %16 = vector.load %arg6[%c0_12, %c0_13] : memref<1x128xf32, #tpu.memory_space<vmem>>, vector<1x128xf32>
    tpu.vector_store %arg6[%c0_12, %c0_13], %15 {strides = array<i32>} : memref<1x128xf32, #tpu.memory_space<vmem>>, vector<1x128xf32>,
    %c0_i32_14 = arith.constant 0 : i32
    %17 = arith.cmpi eq, %arg0, %c0_i32_14 : i32
    %18 = arith.extui %17 : i1 to i32
    %c0_i32_15 = arith.constant 0 : i32
    %19 = arith.cmpi ne, %18, %c0_i32_15 : i32
    scf.if %19 {
      %c0_16 = arith.constant 0 : index
      %c0_17 = arith.constant 0 : index
      %20 = vector.load %arg5[%c0_16, %c0_17] : memref<1x128xf32, #tpu.memory_space<vmem>>, vector<1x128xf32>
      %c0_18 = arith.constant 0 : index
      %c0_19 = arith.constant 0 : index
      %21 = vector.load %arg3[%c0_18, %c0_19] : memref<1x128xf32, #tpu.memory_space<vmem>>, vector<1x128xf32>
      tpu.vector_store %arg3[%c0_18, %c0_19], %20 {strides = array<i32>} : memref<1x128xf32, #tpu.memory_space<vmem>>, vector<1x128xf32>,
      %c0_20 = arith.constant 0 : index
      %c0_21 = arith.constant 0 : index
      %22 = vector.load %arg6[%c0_20, %c0_21] : memref<1x128xf32, #tpu.memory_space<vmem>>, vector<1x128xf32>
      %c0_22 = arith.constant 0 : index
      %c0_23 = arith.constant 0 : index
      %23 = vector.load %arg4[%c0_22, %c0_23] : memref<1x128xf32, #tpu.memory_space<vmem>>, vector<1x128xf32>
      tpu.vector_store %arg4[%c0_22, %c0_23], %22 {strides = array<i32>} : memref<1x128xf32, #tpu.memory_space<vmem>>, vector<1x128xf32>,
    } else {
    }
    return
  }
  func.func @transform_0(%arg0: i32) -> (i32, i32) {
    %c0_i32 = arith.constant 0 : i32
    %c0_i32_0 = arith.constant 0 : i32
    return %arg0, %c0_i32 : i32, i32
  }
  func.func @transform_1(%arg0: i32) -> (i32, i32) {
    %c0_i32 = arith.constant 0 : i32
    %c0_i32_0 = arith.constant 0 : i32
    %c0_i32_1 = arith.constant 0 : i32
    return %c0_i32, %c0_i32_0 : i32, i32
  }
  func.func @transform_2(%arg0: i32) -> (i32, i32) {
    %c0_i32 = arith.constant 0 : i32
    %c0_i32_0 = arith.constant 0 : i32
    %c0_i32_1 = arith.constant 0 : i32
    return %c0_i32, %c0_i32_0 : i32, i32
  }
  func.func @transform_3(%arg0: i32) -> (i32, i32) {
    %c0_i32 = arith.constant 0 : i32
    %c0_i32_0 = arith.constant 0 : i32
    %c0_i32_1 = arith.constant 0 : i32
    return %c0_i32, %c0_i32_0 : i32, i32
  }
}

</mosaic_0001>

<llo_original>
// kernel: tpu_custom_call.1
$region0: #{tpu_custom_call.1}
  #allocation0 [shape = 'u32[]', space=smem, size = 0x4, offset = 0x4, fixed_abs, tag = 'smem constant byte address 0x4 - core index']
  #allocation1 [shape = 'u32[144,128]{1,0:T(1,128)}', space=vmem, size = 0x12000, scoped, tag = 'internal scratch']
  #allocation2 [shape = 'f32[1,128]{1,0:T(1,128)}', space=vmem, size = 0x200, scoped, tag = 'scratch operand']
  #allocation3 [shape = 'f32[1,128]{1,0:T(1,128)}', space=vmem, size = 0x200, scoped, tag = 'scratch operand']
  %s0 = inlined_call_operand.vmem [shape: f32[128,36], index: 0, kind: input, shape index: {}]
  %s1 = inlined_call_operand.vmem [shape: f32[36,128], index: 1, kind: input, shape index: {}]
  %s2 = inlined_call_operand.hbm [shape: f32[1,128], index: 2, kind: output, shape index: {0}]
  %s3 = inlined_call_operand.hbm [shape: f32[1,128], index: 3, kind: output, shape index: {1}]
  %4 = xla_tuple %s2, %s3
  %s5 = sld [smem:[#allocation0]]
  $region34: #{tpu_custom_call.1} parent=0
    _
  %s7 = ssub.s32 1, %s5
  %s8 = scalar_select 0, %s7, %s5
  $region1: #{tpu_custom_call.1} parent=0
    #allocation4 [shape = 'u8[512]{0}', space=vmem, size = 0x400, scoped, tag = 'output window, operand 0, single buffered']
    #allocation5 [shape = 's32[1]{0}', space=sflag, size = 0x4, scoped, tag = 'scoped memory for tpu_custom_call.1']
    #allocation6 [shape = 'u8[512]{0}', space=vmem, size = 0x400, scoped, tag = 'output window, operand 1, single buffered']
    #allocation7 [shape = 's32[1]{0}', space=sflag, size = 0x4, scoped, tag = 'scoped memory for tpu_custom_call.1']
    %9 = vsyncpa [#allocation5], 0
    %10 = vsyncpa [#allocation7], 0
    // Predicated region
    $region2: #{tpu_custom_call.1} parent=1 // pred_check
      _
    $region3: #{tpu_custom_call.1} parent=1 // pred_check_branch
      %12 = sbr.rel (0) target = $region5
    $region4: #{tpu_custom_call.1} parent=1 // pred_region
      _
    $region5: #{tpu_custom_call.1} parent=1 // pred_fallthru
      _
    // Predicated region
    $region6: #{tpu_custom_call.1} parent=1 // pred_check
      _
    $region7: #{tpu_custom_call.1} parent=1 // pred_check_branch
      %14 = sbr.rel (0) target = $region9
    $region8: #{tpu_custom_call.1} parent=1 // pred_region
      _
    $region9: #{tpu_custom_call.1} parent=1 // pred_fallthru
      _
    %p15 = scmp.eq.s32.totalorder 0, 0
    // Predicated region
    $region10: #{tpu_custom_call.1} parent=1 // pred_check
      %p16 = pneg %p15
    $region11: #{tpu_custom_call.1} parent=1 // pred_check_branch
      %18 = sbr.rel (%p16) target = $region13
    $region12: #{tpu_custom_call.1} parent=1 // pred_region
      %19 = vst [vmem:[#allocation2] sm:$0x1] 0.0
      %20 = vst [vmem:[#allocation3] sm:$0x1] 0.0
    $region13: #{tpu_custom_call.1} parent=1 // pred_fallthru
      _
    %v21 = vld [vmem:[%s0] sm:$0xff]
    %v22 = vld [vmem:[%s0 + $0x8] sm:$0xff]
    %v23 = vld [vmem:[%s0 + $0x10] sm:$0xff]
    %v24 = vld [vmem:[%s0 + $0x18] sm:$0xff]
    %v25 = vld [vmem:[%s0 + $0x20] sm:$0xff]
    %v26 = vld [vmem:[%s0 + $0x28] sm:$0xff]
    %v27 = vld [vmem:[%s0 + $0x30] sm:$0xff]
    %v28 = vld [vmem:[%s0 + $0x38] sm:$0xff]
    %v29 = vld [vmem:[%s0 + $0x40] sm:$0xff]
    %v30 = vld [vmem:[%s0 + $0x48] sm:$0xff]
    %v31 = vld [vmem:[%s0 + $0x50] sm:$0xff]
    %v32 = vld [vmem:[%s0 + $0x58] sm:$0xff]
    %v33 = vld [vmem:[%s0 + $0x60] sm:$0xff]
    %v34 = vld [vmem:[%s0 + $0x68] sm:$0xff]
    %v35 = vld [vmem:[%s0 + $0x70] sm:$0xff]
    %v36 = vld [vmem:[%s0 + $0x78] sm:$0xff]
    %v37 = vld [vmem:[%s1] sm:$0xff]
    %v38 = vld [vmem:[%s1 + $0x8] sm:$0xff]
    %v39 = vld [vmem:[%s1 + $0x10] sm:$0xff]
    %v40 = vld [vmem:[%s1 + $0x18] sm:$0xff]
    %v41 = vld [vmem:[%s1 + $0x20] sm:$0xf]
    %vm42 = vcmask 293888
    %v44 = vsel %vm42, %v21, 0
    %v47 = vsel %vm42, %v22, 0
    %v50 = vsel %vm42, %v23, 0
    %v53 = vsel %vm42, %v24, 0
    %v56 = vsel %vm42, %v25, 0
    %v59 = vsel %vm42, %v26, 0
    %v62 = vsel %vm42, %v27, 0
    %v65 = vsel %vm42, %v28, 0
    %v68 = vsel %vm42, %v29, 0
    %v71 = vsel %vm42, %v30, 0
    %v74 = vsel %vm42, %v31, 0
    %v77 = vsel %vm42, %v32, 0
    %v80 = vsel %vm42, %v33, 0
    %v83 = vsel %vm42, %v34, 0
    %v86 = vsel %vm42, %v35, 0
    %v89 = vsel %vm42, %v36, 0
    %vm91 = vcmask 1043456
    %v93 = vsel %vm91, %v41, 0
    %95 = vmatprep.subr.mxu0 0.0
    %96 = vmatpush1.msra.mxu0 %v37
    %97 = vmatprep.subr.mxu0 0.0
    %98 = vmatpush1.msra.mxu0 %v38
    %99 = vmatprep.subr.mxu0 0.0
    %100 = vmatpush1.msra.mxu0 %v39
    %101 = vmatprep.subr.mxu0 0.0
    %102 = vmatpush1.msra.mxu0 %v40
    %103 = vmatprep.subr.mxu0 0.0
    %104 = vmatpush1.msra.mxu0 %v93
    %105 = vmatprep.subr.mxu0 0.0
    %106 = vmatpush1.msra.mxu0 0.0
    %107 = vmatprep.subr.mxu0 0.0
    %108 = vmatpush1.msra.mxu0 0.0
    %109 = vmatprep.subr.mxu0 0.0
    %110 = vmatpush1.msra.mxu0 0.0
    %111 = vmatprep.subr.mxu0 0.0
    %112 = vmatpush1.msra.mxu0 0.0
    %113 = vmatprep.subr.mxu0 0.0
    %114 = vmatpush1.msra.mxu0 0.0
    %115 = vmatprep.subr.mxu0 0.0
    %116 = vmatpush1.msra.mxu0 0.0
    %117 = vmatprep.subr.mxu0 0.0
    %118 = vmatpush1.msra.mxu0 0.0
    %119 = vmatprep.subr.mxu0 0.0
    %120 = vmatpush1.msra.mxu0 0.0
    %121 = vmatprep.subr.mxu0 0.0
    %122 = vmatpush1.msra.mxu0 0.0
    %123 = vmatprep.subr.mxu0 0.0
    %124 = vmatpush1.msra.mxu0 0.0
    %125 = vmatprep.subr.mxu0 0.0
    %126 = vmatpush1.msra.mxu0 0.0
    %127 = vmatprep.subr.mxu0 0.0
    %128 = vmatpush1.msra.mxu0 0.0
    %129 = vmatprep.subr.mxu0 0.0
    %130 = vmatpush1.msra.mxu0 0.0
    %131 = vmatprep.subr.mxu0 0.0
    %132 = vmatpush1.msra.mxu0 0.0
    %133 = vmatprep.subr.mxu0 0.0
    %134 = vmatpush1.msra.mxu0 0.0
    %135 = vmatprep.subr.mxu0 0.0
    %136 = vmatpush1.msra.mxu0 0.0
    %137 = vmatprep.subr.mxu0 0.0
    %138 = vmatpush1.msra.mxu0 0.0
    %139 = vmatprep.subr.mxu0 0.0
    %140 = vmatpush1.msra.mxu0 0.0
    %141 = vmatprep.subr.mxu0 0.0
    %142 = vmatpush1.msra.mxu0 0.0
    %143 = vmatprep.subr.mxu0 0.0
    %144 = vmatpush1.msra.mxu0 0.0
    %145 = vmatprep.subr.mxu0 0.0
    %146 = vmatpush1.msra.mxu0 0.0
    %147 = vmatprep.subr.mxu0 0.0
    %148 = vmatpush1.msra.mxu0 0.0
    %149 = vmatprep.subr.mxu0 0.0
    %150 = vmatpush1.msra.mxu0 0.0
    %151 = vmatprep.subr.mxu0 0.0
    %152 = vmatpush1.msra.mxu0 0.0
    %153 = vmatprep.subr.mxu0 0.0
    %154 = vmatpush1.msra.mxu0 0.0
    %155 = vmatprep.subr.mxu0 0.0
    %156 = vmatpush1.msra.mxu0 0.0
    %157 = vmatprep.subr.mxu0 0.0
    %158 = vmatpush1.msra.mxu0 0.0
    %159 = vmatprep.mubr.f32.mxu0 0.0
    %160 = vmatmul.mubr.f32.gmra.mrb[0].mxu0 %v44
    %v161 = vpop.f32.mrb[0].mxu0
    %v162 = vadd.f32 0.0, %v161
    %v163 = vpop.f32.mrb[0].mxu0
    %164 = vmatprep.mubr.f32.mxu0 0.0
    %165 = vmatmul.mubr.f32.gmra.mrb[0].mxu0 %v47
    %v166 = vpop.f32.mrb[0].mxu0
    %v167 = vadd.f32 0.0, %v166
    %v168 = vpop.f32.mrb[0].mxu0
    %169 = vmatprep.mubr.f32.mxu0 0.0
    %170 = vmatmul.mubr.f32.gmra.mrb[0].mxu0 %v50
    %v171 = vpop.f32.mrb[0].mxu0
    %v172 = vadd.f32 0.0, %v171
    %v173 = vpop.f32.mrb[0].mxu0
    %174 = vmatprep.mubr.f32.mxu0 0.0
    %175 = vmatmul.mubr.f32.gmra.mrb[0].mxu0 %v53
    %v176 = vpop.f32.mrb[0].mxu0
    %v177 = vadd.f32 0.0, %v176
    %v178 = vpop.f32.mrb[0].mxu0
    %179 = vmatprep.mubr.f32.mxu0 0.0
    %180 = vmatmul.mubr.f32.gmra.mrb[0].mxu0 %v56
    %v181 = vpop.f32.mrb[0].mxu0
    %v182 = vadd.f32 0.0, %v181
    %v183 = vpop.f32.mrb[0].mxu0
    %184 = vmatprep.mubr.f32.mxu0 0.0
    %185 = vmatmul.mubr.f32.gmra.mrb[0].mxu0 %v59
    %v186 = vpop.f32.mrb[0].mxu0
    %v187 = vadd.f32 0.0, %v186
    %v188 = vpop.f32.mrb[0].mxu0
    %189 = vmatprep.mubr.f32.mxu0 0.0
    %190 = vmatmul.mubr.f32.gmra.mrb[0].mxu0 %v62
    %v191 = vpop.f32.mrb[0].mxu0
    %v192 = vadd.f32 0.0, %v191
    %v193 = vpop.f32.mrb[0].mxu0
    %194 = vmatprep.mubr.f32.mxu0 0.0
    %195 = vmatmul.mubr.f32.gmra.mrb[0].mxu0 %v65
    %v196 = vpop.f32.mrb[0].mxu0
    %v197 = vadd.f32 0.0, %v196
    %v198 = vpop.f32.mrb[0].mxu0
    %199 = vmatprep.mubr.f32.mxu0 0.0
    %200 = vmatmul.mubr.f32.gmra.mrb[0].mxu0 %v68
    %v201 = vpop.f32.mrb[0].mxu0
    %v202 = vadd.f32 0.0, %v201
    %v203 = vpop.f32.mrb[0].mxu0
    %204 = vmatprep.mubr.f32.mxu0 0.0
    %205 = vmatmul.mubr.f32.gmra.mrb[0].mxu0 %v71
    %v206 = vpop.f32.mrb[0].mxu0
    %v207 = vadd.f32 0.0, %v206
    %v208 = vpop.f32.mrb[0].mxu0
    %209 = vmatprep.mubr.f32.mxu0 0.0
    %210 = vmatmul.mubr.f32.gmra.mrb[0].mxu0 %v74
    %v211 = vpop.f32.mrb[0].mxu0
    %v212 = vadd.f32 0.0, %v211
    %v213 = vpop.f32.mrb[0].mxu0
    %214 = vmatprep.mubr.f32.mxu0 0.0
    %215 = vmatmul.mubr.f32.gmra.mrb[0].mxu0 %v77
    %v216 = vpop.f32.mrb[0].mxu0
    %v217 = vadd.f32 0.0, %v216
    %v218 = vpop.f32.mrb[0].mxu0
    %219 = vmatprep.mubr.f32.mxu0 0.0
    %220 = vmatmul.mubr.f32.gmra.mrb[0].mxu0 %v80
    %v221 = vpop.f32.mrb[0].mxu0
    %v222 = vadd.f32 0.0, %v221
    %v223 = vpop.f32.mrb[0].mxu0
    %224 = vmatprep.mubr.f32.mxu0 0.0
    %225 = vmatmul.mubr.f32.gmra.mrb[0].mxu0 %v83
    %v226 = vpop.f32.mrb[0].mxu0
    %v227 = vadd.f32 0.0, %v226
    %v228 = vpop.f32.mrb[0].mxu0
    %229 = vmatprep.mubr.f32.mxu0 0.0
    %230 = vmatmul.mubr.f32.gmra.mrb[0].mxu0 %v86
    %v231 = vpop.f32.mrb[0].mxu0
    %v232 = vadd.f32 0.0, %v231
    %v233 = vpop.f32.mrb[0].mxu0
    %234 = vmatprep.mubr.f32.mxu0 0.0
    %235 = vmatmul.mubr.f32.gmra.mrb[0].mxu0 %v89
    %v236 = vpop.f32.mrb[0].mxu0
    %v237 = vadd.f32 0.0, %v236
    %v238 = vpop.f32.mrb[0].mxu0
    %239 = vdwg.mxu0
    %v240 = vld [vmem:[#allocation2] sm:$0x1]
    %v241 = vadd.f32 %v162, %v167
    %v242 = vadd.f32 %v241, %v172
    %v243 = vadd.f32 %v242, %v177
    %v244 = vadd.f32 %v243, %v182
    %v245 = vadd.f32 %v244, %v187
    %v246 = vadd.f32 %v245, %v192
    %v247 = vadd.f32 %v246, %v197
    %v248 = vadd.f32 %v247, %v202
    %v249 = vadd.f32 %v248, %v207
    %v250 = vadd.f32 %v249, %v212
    %v251 = vadd.f32 %v250, %v217
    %v252 = vadd.f32 %v251, %v222
    %v253 = vadd.f32 %v252, %v227
    %v254 = vadd.f32 %v253, %v232
    %v255 = vadd.f32 %v254, %v237
    %v256 = vrot.slane %v255, 4
    %v257 = vadd.f32 %v255, %v256
    %v258 = vrot.slane %v257, 2
    %v259 = vadd.f32 %v257, %v258
    %v260 = vrot.slane %v259, 1
    %v261 = vadd.f32 %v259, %v260
    %v262 = vadd.f32 %v240, %v261
    %263 = vst [vmem:[#allocation2] sm:$0x1] %v262
    %v264 = vld [vmem:[#allocation3] sm:$0x1]
    %v265 = vmul.f32 %v162, %v162
    %v266 = vmul.f32 %v167, %v167
    %v267 = vmul.f32 %v172, %v172
    %v268 = vmul.f32 %v177, %v177
    %v269 = vmul.f32 %v182, %v182
    %v270 = vmul.f32 %v187, %v187
    %v271 = vmul.f32 %v192, %v192
    %v272 = vmul.f32 %v197, %v197
    %v273 = vmul.f32 %v202, %v202
    %v274 = vmul.f32 %v207, %v207
    %v275 = vmul.f32 %v212, %v212
    %v276 = vmul.f32 %v217, %v217
    %v277 = vmul.f32 %v222, %v222
    %v278 = vmul.f32 %v227, %v227
    %v279 = vmul.f32 %v232, %v232
    %v280 = vmul.f32 %v237, %v237
    %v281 = vadd.f32 %v265, %v266
    %v282 = vadd.f32 %v281, %v267
    %v283 = vadd.f32 %v282, %v268
    %v284 = vadd.f32 %v283, %v269
    %v285 = vadd.f32 %v284, %v270
    %v286 = vadd.f32 %v285, %v271
    %v287 = vadd.f32 %v286, %v272
    %v288 = vadd.f32 %v287, %v273
    %v289 = vadd.f32 %v288, %v274
    %v290 = vadd.f32 %v289, %v275
    %v291 = vadd.f32 %v290, %v276
    %v292 = vadd.f32 %v291, %v277
    %v293 = vadd.f32 %v292, %v278
    %v294 = vadd.f32 %v293, %v279
    %v295 = vadd.f32 %v294, %v280
    %v296 = vrot.slane %v295, 4
    %v297 = vadd.f32 %v295, %v296
    %v298 = vrot.slane %v297, 2
    %v299 = vadd.f32 %v297, %v298
    %v300 = vrot.slane %v299, 1
    %v301 = vadd.f32 %v299, %v300
    %v302 = vadd.f32 %v264, %v301
    %303 = vst [vmem:[#allocation3] sm:$0x1] %v302
    // Predicated region
    $region14: #{tpu_custom_call.1} parent=1 // pred_check
      %p304 = pneg %p15
    $region15: #{tpu_custom_call.1} parent=1 // pred_check_branch
      %306 = sbr.rel (%p304) target = $region17
    $region16: #{tpu_custom_call.1} parent=1 // pred_region
      %v307 = vld [vmem:[#allocation2] sm:$0x1]
      %308 = vst [vmem:[#allocation4] sm:$0x1] %v307
      %v309 = vld [vmem:[#allocation3] sm:$0x1]
      %310 = vst [vmem:[#allocation6] sm:$0x1] %v309
    $region17: #{tpu_custom_call.1} parent=1 // pred_fallthru
      _
    // Predicated region
    $region18: #{tpu_custom_call.1} parent=1 // pred_check
      _
    $region19: #{tpu_custom_call.1} parent=1 // pred_check_branch
      %312 = sbr.rel (0) target = $region21
    $region20: #{tpu_custom_call.1} parent=1 // pred_region
      %s314 = ssub.s32 16, 16
      %315 = vsyncadd [#allocation5], %s314
      %s317 = sshll.u32 [#allocation4], 4
      %s318 = int_to_ptr.vmem [resolvable:$true] %s317
      %320 = dma.vmem_to_hbm [thread:$0]  %s318, 16, %s2, [#allocation5]
    $region21: #{tpu_custom_call.1} parent=1 // pred_fallthru
      _
    // Predicated region
    $region22: #{tpu_custom_call.1} parent=1 // pred_check
      _
    $region23: #{tpu_custom_call.1} parent=1 // pred_check_branch
      %322 = sbr.rel (0) target = $region25
    $region24: #{tpu_custom_call.1} parent=1 // pred_region
      %s324 = ssub.s32 16, 16
      %325 = vsyncadd [#allocation7], %s324
      %s327 = sshll.u32 [#allocation6], 4
      %s328 = int_to_ptr.vmem [resolvable:$true] %s327
      %330 = dma.vmem_to_hbm [thread:$0]  %s328, 16, %s3, [#allocation7]
    $region25: #{tpu_custom_call.1} parent=1 // pred_fallthru
      _
    // Predicated region
    $region26: #{tpu_custom_call.1} parent=1 // pred_check
      _
    $region27: #{tpu_custom_call.1} parent=1 // pred_check_branch
      %332 = sbr.rel (0) target = $region29
    $region28: #{tpu_custom_call.1} parent=1 // pred_region
      %333 = dma.done [#allocation5], 16
    $region29: #{tpu_custom_call.1} parent=1 // pred_fallthru
      _
    // Predicated region
    $region30: #{tpu_custom_call.1} parent=1 // pred_check
      _
    $region31: #{tpu_custom_call.1} parent=1 // pred_check_branch
      %335 = sbr.rel (0) target = $region33
    $region32: #{tpu_custom_call.1} parent=1 // pred_region
      %336 = dma.done [#allocation7], 16
    $region33: #{tpu_custom_call.1} parent=1 // pred_fallthru
      _
    %337 = vsyncpa [#allocation5], 1
    %338 = vsyncpa [#allocation7], 1

</llo_original>
